<compile_context>
chip_gen: v7x
topology: tpu7x:2x2x1
jax: 0.10.0
libtpu: 0.0.40
codegen_flags: <defaults>
</compile_context>

<pallas_src>
import math

import jax
import jax.numpy as jnp
from jax.experimental import pallas as pl
from jax.experimental.pallas import tpu as pltpu

_LANE = 128


def _round_up(v, m):
    return ((v + m - 1) // m) * m


def _pick_tm(n, *, min_steps=4):
    """Largest power-of-two row tile dividing n that yields >= min_steps grid steps."""
    for tm in (512, 256, 128, 64, 32, 16, 8):
        if tm <= n and n % tm == 0 and n // tm >= min_steps:
            return tm
    for tm in (64, 32, 16, 8):
        if tm <= n and n % tm == 0:
            return tm
    return n


def _vmem_limit_bytes():
    # ~75% of physical VMEM; v7x has 64 MiB per TensorCore (vs 128 MiB on v5e/v6e).
    try:
        cap = pltpu.get_tpu_info().vmem_capacity_bytes
    except Exception:  # pragma: no cover - conservative fallback (v7x floor)
        cap = 64 * 1024 * 1024
    return int(cap) * 3 // 4


def _graphconv_layer_kernel(a_ref, x_ref, w_ref, b_ref, o_ref):
    """One GraphConv layer for one block of destination nodes.

    a_ref : (tm, N)          bf16  adjacency rows, a[dst, src] = #edges(src->dst)
    x_ref : (N, Cp_in)       bf16  all node features (channels zero-padded to 128*k)
    w_ref : (2*Cp_in, Cp_out) bf16 stacked [[W_rel^T],[W_root^T]], zero-padded
    b_ref : (1, Cp_out)      f32   lin_rel bias, zero-padded
    o_ref : (tm, Cp_out)           out = (A_blk @ X) W_rel^T + X_blk W_root^T + b
    """
    tm = o_ref.shape[0]
    row0 = pl.multiple_of(pl.program_id(0) * tm, tm)

    # Neighbour aggregation for this destination block (f32 MXU accumulation).
    agg = jnp.dot(a_ref[...], x_ref[...], preferred_element_type=jnp.float32)

    # Single fused weight matmul: [agg | x_blk] @ [[W_rel^T],[W_root^T]], K = 2*Cp_in.
    x_blk = x_ref[pl.ds(row0, tm), :]
    z = jnp.concatenate([agg.astype(jnp.bfloat16), x_blk], axis=-1)
    out = jnp.dot(z, w_ref[...], preferred_element_type=jnp.float32) + b_ref[...]
    o_ref[...] = out.astype(o_ref.dtype)


def graphconv_layer(a_bf16, x_pad_bf16, w_rel, w_root, bias, *, out_dtype=jnp.bfloat16):
    """One PyG GraphConv (aggr='add') layer on a channel-padded bf16 feature matrix.

    a_bf16       : (N, N)  bf16 dense adjacency
    x_pad_bf16   : (N, Cp) bf16, Cp multiple of 128, columns >= true C_in are zero
    w_rel/w_root : (C_out, C_in) f32 in PyG nn.Linear layout (applied as x @ W^T)
    bias         : (C_out,) f32
    Returns (N, round_up(C_out, 128)); columns >= C_out are exactly zero.
    """
    n, cp_in = x_pad_bf16.shape
    assert a_bf16.shape == (n, n)
    assert cp_in % _LANE == 0
    c_out, c_in = w_rel.shape
    assert w_root.shape == (c_out, c_in) and c_in <= cp_in
    cp_out = _round_up(c_out, _LANE)

    # Stack the two weights along the contraction axis; zero rows/cols make the padded
    # input/output channels contribute exact zeros.
    w_rel_t = jnp.zeros((cp_in, cp_out), jnp.float32).at[:c_in, :c_out].set(w_rel.T)
    w_root_t = jnp.zeros((cp_in, cp_out), jnp.float32).at[:c_in, :c_out].set(w_root.T)
    w_stack = jnp.concatenate([w_rel_t, w_root_t], axis=0).astype(jnp.bfloat16)
    b_pad = jnp.zeros((1, cp_out), jnp.float32).at[0, :c_out].set(bias)

    vmem_limit = _vmem_limit_bytes()
    out_isize = jnp.dtype(out_dtype).itemsize
    resident = n * cp_in * 2 + 2 * cp_in * cp_out * 2 + cp_out * 4  # X + Wstack + bias
    tm = _pick_tm(n)
    # Shrink the A row tile if double-buffered slabs would not fit the VMEM budget.
    while (tm > 8 and n % (tm // 2) == 0 and
           (2 * tm * n * 2 + 2 * tm * cp_out * out_isize + 2 * resident) > vmem_limit):
        tm //= 2

    return pl.pallas_call(
        _graphconv_layer_kernel,
        out_shape=jax.ShapeDtypeStruct((n, cp_out), out_dtype),
        grid_spec=pltpu.PrefetchScalarGridSpec(
            num_scalar_prefetch=0,
            grid=(n // tm,),
            in_specs=[
                pl.BlockSpec((tm, n), lambda i: (i, 0)),             # A rows: streamed
                pl.BlockSpec((n, cp_in), lambda i: (0, 0)),          # X: resident
                pl.BlockSpec((2 * cp_in, cp_out), lambda i: (0, 0)),  # stacked weights
                pl.BlockSpec((1, cp_out), lambda i: (0, 0)),          # bias
            ],
            out_specs=pl.BlockSpec((tm, cp_out), lambda i: (i, 0)),
        ),
        compiler_params=pltpu.CompilerParams(
            dimension_semantics=("parallel",),  # independent dst blocks -> v7x 2-TC split
            vmem_limit_bytes=vmem_limit,
        ),
    )(a_bf16, x_pad_bf16, w_stack, b_pad)


def dense_adjacency(edge_index, num_nodes):
    """Dense adjacency for 'add' aggregation: A[dst, src] += 1 per edge (plain-JAX glue).

    Note: bf16 A is exact only while per-pair edge multiplicities stay <= 256.
    """
    src, dst = edge_index[0], edge_index[1]
    ones = jnp.ones(src.shape, jnp.float32)
    return jnp.zeros((num_nodes, num_nodes), jnp.float32).at[dst, src].add(ones)


def graphconv_decoder(x, edge_index, params1, params2, *, out_dtype=jnp.float32):
    """Decoder forward: conv2(conv1(x, edge_index), edge_index). params = (w_rel, w_root, b)."""
    n, c_in = x.shape
    c_out = params2[0].shape[0]

    a_bf = dense_adjacency(edge_index, n).astype(jnp.bfloat16)
    cp_in = _round_up(c_in, _LANE)
    x_pad = jnp.zeros((n, cp_in), jnp.float32).at[:, :c_in].set(x).astype(jnp.bfloat16)

    h_pad = graphconv_layer(a_bf, x_pad, *params1, out_dtype=jnp.bfloat16)
    y_pad = graphconv_layer(a_bf, h_pad, *params2, out_dtype=out_dtype)
    return y_pad[:, :c_out]  # drop lane padding outside the pallas_call


def glorot(key, shape):
    fan_out, fan_in = shape
    bound = math.sqrt(6.0 / (fan_in + fan_out))
    return jax.random.uniform(key, shape, jnp.float32, -bound, bound)


def _reference(x, edge_index, params1, params2):
    """Pure-JAX mirror of the kernel's quantization points (bf16 operands, f32 accum)."""
    n = x.shape[0]
    a_bf = dense_adjacency(edge_index, n).astype(jnp.bfloat16)

    def layer(xb, w_rel, w_root, b):
        agg = jnp.dot(a_bf, xb, preferred_element_type=jnp.float32).astype(jnp.bfloat16)
        return (jnp.dot(agg, w_rel.T.astype(jnp.bfloat16), preferred_element_type=jnp.float32)
                + jnp.dot(xb, w_root.T.astype(jnp.bfloat16), preferred_element_type=jnp.float32)
                + b[None, :])

    h = layer(x.astype(jnp.bfloat16), *params1).astype(jnp.bfloat16)
    return layer(h, *params2)


if __name__ == "__main__":
    key = jax.random.PRNGKey(0)
    kx, ke, k1, k2, k3, k4, kb1, kb2 = jax.random.split(key, 8)

    N, E = 128, 256          # nodes / edges
    C_IN, C_OUT = 64, 32     # decoder: conv1 C_IN->C_IN, conv2 C_IN->C_OUT

    x = jax.random.normal(kx, (N, C_IN), dtype=jnp.float32)
    edge_index = jax.random.randint(ke, (2, E), 0, N, dtype=jnp.int32)

    # PyG parameters: nn.Linear stores (out, in) and applies x @ W^T; lin_rel owns the bias.
    params1 = (glorot(k1, (C_IN, C_IN)), glorot(k2, (C_IN, C_IN)),
               0.1 * jax.random.normal(kb1, (C_IN,), jnp.float32))
    params2 = (glorot(k3, (C_OUT, C_IN)), glorot(k4, (C_OUT, C_IN)),
               0.1 * jax.random.normal(kb2, (C_OUT,), jnp.float32))

    out = jax.jit(graphconv_decoder)(x, edge_index, params1, params2)
    jax.block_until_ready(out)

    # Outputs differ from exact-fp32 PyTorch GraphConv by ~1e-2 due to bf16 MXU operands;
    # the reference mirrors the kernel's quantization points, so the check is tight.
    ref = _reference(x, edge_index, params1, params2)
    assert out.shape == (N, C_OUT), out.shape
    max_err = float(jnp.max(jnp.abs(out - ref)))
    assert jnp.allclose(out, ref, atol=2e-2, rtol=2e-2), max_err

    print("KERNEL_OK")
</pallas_src>

<mosaic_0001>
module attributes {stable_mosaic.version = 11 : i64} {
  func.func private @main(%arg0: i32) attributes {dimension_semantics = [#tpu.dimension_semantics<core_parallel>], iteration_bounds = array<i64: 2>, tpu.core_type = #tpu.core_type<sc_scalar_subcore>, window_params = []} {
    return
  }
}

module attributes {stable_mosaic.version = 11 : i64} {
  func.func private @main(%arg0: i32) attributes {dimension_semantics = [#tpu.dimension_semantics<core_parallel>], iteration_bounds = array<i64: 2>, tpu.core_type = #tpu.core_type<sc_scalar_subcore>, window_params = []} {
    return
  }
}

module attributes {stable_mosaic.version = 11 : i64} {
  func.func @_graphconv_layer_kernel(%arg0: i32, %arg1: memref<32x128xbf16, #tpu.memory_space<vmem>>, %arg2: memref<128x128xbf16, #tpu.memory_space<vmem>>, %arg3: memref<256x128xbf16, #tpu.memory_space<vmem>>, %arg4: memref<1x128xf32, #tpu.memory_space<vmem>>, %arg5: memref<32x128xf32, #tpu.memory_space<vmem>>) attributes {dimension_semantics = [#tpu.dimension_semantics<parallel>], iteration_bounds = array<i64: 4>, scalar_prefetch = 0 : i64, scratch_operands = 0 : i64, tpu.core_type = #tpu.core_type<tc>, window_params = [{transform_indices = @transform_0, window_bounds = array<i64: 32, 128>}, {pipeline_mode = #tpu.pipeline_mode<synchronous>, transform_indices = @transform_1, window_bounds = array<i64: 128, 128>}, {pipeline_mode = #tpu.pipeline_mode<synchronous>, transform_indices = @transform_2, window_bounds = array<i64: 256, 128>}, {pipeline_mode = #tpu.pipeline_mode<synchronous>, transform_indices = @transform_3, window_bounds = array<i64: 1, 128>}, {transform_indices = @transform_4, window_bounds = array<i64: 32, 128>}]} {
    %c32_i32 = arith.constant 32 : i32
    %0 = arith.muli %arg0, %c32_i32 : i32
    %1 = tpu.assume_multiple %0, 32 : i32
    %c0 = arith.constant 0 : index
    %c0_0 = arith.constant 0 : index
    %2 = vector.load %arg1[%c0, %c0_0] : memref<32x128xbf16, #tpu.memory_space<vmem>>, vector<32x128xbf16>
    %c0_1 = arith.constant 0 : index
    %c0_2 = arith.constant 0 : index
    %3 = vector.load %arg2[%c0_1, %c0_2] : memref<128x128xbf16, #tpu.memory_space<vmem>>, vector<128x128xbf16>
    %cst = arith.constant dense<0.000000e+00> : vector<32x128xf32>
    %4 = tpu.matmul %2, %3, %cst {dimension_numbers = #tpu.dot_dimension_numbers<[1], [0], [0], [1], [0, 0, 1, 1], [], []>} : vector<32x128xbf16>, vector<128x128xbf16>, vector<32x128xf32> -> vector<32x128xf32>
    %5 = arith.index_cast %1 : i32 to index
    %c0_3 = arith.constant 0 : index
    %6 = vector.load %arg2[%5, %c0_3] : memref<128x128xbf16, #tpu.memory_space<vmem>>, vector<32x128xbf16>
    %7 = arith.truncf %4 : vector<32x128xf32> to vector<32x128xbf16>
    %8 = tpu.concatenate %7, %6 in 1 : vector<32x128xbf16>, vector<32x128xbf16> -> vector<32x256xbf16>
    %c0_4 = arith.constant 0 : index
    %c0_5 = arith.constant 0 : index
    %9 = vector.load %arg3[%c0_4, %c0_5] : memref<256x128xbf16, #tpu.memory_space<vmem>>, vector<256x128xbf16>
    %cst_6 = arith.constant dense<0.000000e+00> : vector<32x128xf32>
    %10 = tpu.matmul %8, %9, %cst_6 {dimension_numbers = #tpu.dot_dimension_numbers<[1], [0], [0], [1], [0, 0, 1, 1], [], []>} : vector<32x256xbf16>, vector<256x128xbf16>, vector<32x128xf32> -> vector<32x128xf32>
    %c0_7 = arith.constant 0 : index
    %c0_8 = arith.constant 0 : index
    %11 = vector.load %arg4[%c0_7, %c0_8] : memref<1x128xf32, #tpu.memory_space<vmem>>, vector<1x128xf32>
    %12 = vector.broadcast %11 : vector<1x128xf32> to vector<32x128xf32>
    %13 = arith.addf %10, %12 : vector<32x128xf32>
    %c0_9 = arith.constant 0 : index
    %c0_10 = arith.constant 0 : index
    %14 = vector.load %arg5[%c0_9, %c0_10] : memref<32x128xf32, #tpu.memory_space<vmem>>, vector<32x128xf32>
    tpu.vector_store %arg5[%c0_9, %c0_10], %13 {strides = array<i32>} : memref<32x128xf32, #tpu.memory_space<vmem>>, vector<32x128xf32>,
    return
  }
  func.func @transform_0(%arg0: i32) -> (i32, i32) {
    %c0_i32 = arith.constant 0 : i32
    %c0_i32_0 = arith.constant 0 : i32
    return %arg0, %c0_i32 : i32, i32
  }
  func.func @transform_1(%arg0: i32) -> (i32, i32) {
    %c0_i32 = arith.constant 0 : i32
    %c0_i32_0 = arith.constant 0 : i32
    %c0_i32_1 = arith.constant 0 : i32
    return %c0_i32, %c0_i32_0 : i32, i32
  }
  func.func @transform_2(%arg0: i32) -> (i32, i32) {
    %c0_i32 = arith.constant 0 : i32
    %c0_i32_0 = arith.constant 0 : i32
    %c0_i32_1 = arith.constant 0 : i32
    return %c0_i32, %c0_i32_0 : i32, i32
  }
  func.func @transform_3(%arg0: i32) -> (i32, i32) {
    %c0_i32 = arith.constant 0 : i32
    %c0_i32_0 = arith.constant 0 : i32
    %c0_i32_1 = arith.constant 0 : i32
    return %c0_i32, %c0_i32_0 : i32, i32
  }
  func.func @transform_4(%arg0: i32) -> (i32, i32) {
    %c0_i32 = arith.constant 0 : i32
    %c0_i32_0 = arith.constant 0 : i32
    return %arg0, %c0_i32 : i32, i32
  }
}

module attributes {stable_mosaic.version = 11 : i64} {
  func.func @_graphconv_layer_kernel(%arg0: i32, %arg1: memref<32x128xbf16, #tpu.memory_space<vmem>>, %arg2: memref<128x128xbf16, #tpu.memory_space<vmem>>, %arg3: memref<256x128xbf16, #tpu.memory_space<vmem>>, %arg4: memref<1x128xf32, #tpu.memory_space<vmem>>, %arg5: memref<32x128xbf16, #tpu.memory_space<vmem>>) attributes {dimension_semantics = [#tpu.dimension_semantics<parallel>], iteration_bounds = array<i64: 4>, scalar_prefetch = 0 : i64, scratch_operands = 0 : i64, tpu.core_type = #tpu.core_type<tc>, window_params = [{transform_indices = @transform_0, window_bounds = array<i64: 32, 128>}, {pipeline_mode = #tpu.pipeline_mode<synchronous>, transform_indices = @transform_1, window_bounds = array<i64: 128, 128>}, {pipeline_mode = #tpu.pipeline_mode<synchronous>, transform_indices = @transform_2, window_bounds = array<i64: 256, 128>}, {pipeline_mode = #tpu.pipeline_mode<synchronous>, transform_indices = @transform_3, window_bounds = array<i64: 1, 128>}, {transform_indices = @transform_4, window_bounds = array<i64: 32, 128>}]} {
    %c32_i32 = arith.constant 32 : i32
    %0 = arith.muli %arg0, %c32_i32 : i32
    %1 = tpu.assume_multiple %0, 32 : i32
    %c0 = arith.constant 0 : index
    %c0_0 = arith.constant 0 : index
    %2 = vector.load %arg1[%c0, %c0_0] : memref<32x128xbf16, #tpu.memory_space<vmem>>, vector<32x128xbf16>
    %c0_1 = arith.constant 0 : index
    %c0_2 = arith.constant 0 : index
    %3 = vector.load %arg2[%c0_1, %c0_2] : memref<128x128xbf16, #tpu.memory_space<vmem>>, vector<128x128xbf16>
    %cst = arith.constant dense<0.000000e+00> : vector<32x128xf32>
    %4 = tpu.matmul %2, %3, %cst {dimension_numbers = #tpu.dot_dimension_numbers<[1], [0], [0], [1], [0, 0, 1, 1], [], []>} : vector<32x128xbf16>, vector<128x128xbf16>, vector<32x128xf32> -> vector<32x128xf32>
    %5 = arith.index_cast %1 : i32 to index
    %c0_3 = arith.constant 0 : index
    %6 = vector.load %arg2[%5, %c0_3] : memref<128x128xbf16, #tpu.memory_space<vmem>>, vector<32x128xbf16>
    %7 = arith.truncf %4 : vector<32x128xf32> to vector<32x128xbf16>
    %8 = tpu.concatenate %7, %6 in 1 : vector<32x128xbf16>, vector<32x128xbf16> -> vector<32x256xbf16>
    %c0_4 = arith.constant 0 : index
    %c0_5 = arith.constant 0 : index
    %9 = vector.load %arg3[%c0_4, %c0_5] : memref<256x128xbf16, #tpu.memory_space<vmem>>, vector<256x128xbf16>
    %cst_6 = arith.constant dense<0.000000e+00> : vector<32x128xf32>
    %10 = tpu.matmul %8, %9, %cst_6 {dimension_numbers = #tpu.dot_dimension_numbers<[1], [0], [0], [1], [0, 0, 1, 1], [], []>} : vector<32x256xbf16>, vector<256x128xbf16>, vector<32x128xf32> -> vector<32x128xf32>
    %c0_7 = arith.constant 0 : index
    %c0_8 = arith.constant 0 : index
    %11 = vector.load %arg4[%c0_7, %c0_8] : memref<1x128xf32, #tpu.memory_space<vmem>>, vector<1x128xf32>
    %12 = vector.broadcast %11 : vector<1x128xf32> to vector<32x128xf32>
    %13 = arith.addf %10, %12 : vector<32x128xf32>
    %14 = arith.truncf %13 : vector<32x128xf32> to vector<32x128xbf16>
    %c0_9 = arith.constant 0 : index
    %c0_10 = arith.constant 0 : index
    %15 = vector.load %arg5[%c0_9, %c0_10] : memref<32x128xbf16, #tpu.memory_space<vmem>>, vector<32x128xbf16>
    tpu.vector_store %arg5[%c0_9, %c0_10], %14 {strides = array<i32>} : memref<32x128xbf16, #tpu.memory_space<vmem>>, vector<32x128xbf16>,
    return
  }
  func.func @transform_0(%arg0: i32) -> (i32, i32) {
    %c0_i32 = arith.constant 0 : i32
    %c0_i32_0 = arith.constant 0 : i32
    return %arg0, %c0_i32 : i32, i32
  }
  func.func @transform_1(%arg0: i32) -> (i32, i32) {
    %c0_i32 = arith.constant 0 : i32
    %c0_i32_0 = arith.constant 0 : i32
    %c0_i32_1 = arith.constant 0 : i32
    return %c0_i32, %c0_i32_0 : i32, i32
  }
  func.func @transform_2(%arg0: i32) -> (i32, i32) {
    %c0_i32 = arith.constant 0 : i32
    %c0_i32_0 = arith.constant 0 : i32
    %c0_i32_1 = arith.constant 0 : i32
    return %c0_i32, %c0_i32_0 : i32, i32
  }
  func.func @transform_3(%arg0: i32) -> (i32, i32) {
    %c0_i32 = arith.constant 0 : i32
    %c0_i32_0 = arith.constant 0 : i32
    %c0_i32_1 = arith.constant 0 : i32
    return %c0_i32, %c0_i32_0 : i32, i32
  }
  func.func @transform_4(%arg0: i32) -> (i32, i32) {
    %c0_i32 = arith.constant 0 : i32
    %c0_i32_0 = arith.constant 0 : i32
    return %arg0, %c0_i32 : i32, i32
  }
}

</mosaic_0001>

<llo_original>
// kernel: graphconv_decoder.3
$region0: #{graphconv_decoder.3}
  #allocation0 [shape = 'u32[]', space=smem, size = 0x4, offset = 0x4, fixed_abs, tag = 'smem constant byte address 0x4 - core index']
  #allocation1 [shape = 'u32[144,128]{1,0:T(1,128)}', space=vmem, size = 0x12000, scoped, tag = 'internal scratch']
  %s0 = inlined_call_operand.vmem [shape: bf16[128,128], index: 0, kind: input, shape index: {}]
  %s1 = inlined_call_operand.vmem [shape: bf16[128,128], index: 1, kind: input, shape index: {}]
  %s2 = inlined_call_operand.vmem [shape: bf16[256,128], index: 2, kind: input, shape index: {}]
  %s3 = inlined_call_operand.vmem [shape: f32[1,128], index: 3, kind: input, shape index: {}]
  %s4 = inlined_call_operand.vmem [shape: f32[128,128], index: 4, kind: output, shape index: {}]
  %s5 = sld [smem:[#allocation0]]
  $region49: #{graphconv_decoder.3} parent=0
    _
  %s7 = ssub.s32 1, %s5
  %s8 = scalar_select 0, %s7, %s5
  loop: start=0, step=1, limit=6
  $region2: #{graphconv_decoder.3} parent=0 // loop_pre_header
    _
  $region3: #{graphconv_decoder.3} parent=0 // loop_header
    %s10 = sphi 0, %s14
    %p11 = scmp.ge.s32.totalorder %s10, 6
    %s20 = sphi 0, %s22
    %s23 = sphi 0, %s20
    %s24 = sphi 0, %s23
    %s40 = sphi 0, %s24
    %s44 = sphi 0, %s44
    %s46 = sphi 0, %s44
    %s47 = sphi 0, %s46
    %s61 = sphi 0, %s47
    %s65 = sphi 0, %s65
    %s67 = sphi 0, %s65
    %s68 = sphi 0, %s67
    %s82 = sphi 0, %s68
    %s86 = sphi 0, %s86
    %s88 = sphi 0, %s86
    %s89 = sphi 0, %s88
    %s103 = sphi 0, %s89
    %s109 = sphi 0, %s111
    %s112 = sphi 0, %s109
    %s113 = sphi 0, %s112
    %s129 = sphi 0, %s113
  $region4: #{graphconv_decoder.3} parent=0 // loop_header_branch
    %13 = sbr.rel (%p11) target = $region8
  $region5: #{graphconv_decoder.3} parent=0 // loop_body
    %s15 = ssub.s32 %s10, 1
    %s16 = ssub.s32 %s10, 2
    %s17 = sadd.s32 %s10, 1
    %s18 = ssub.s32 %s10, %s17
    %p19 = scmp.eq.s32.totalorder %s18, 0
    %s21 = sadd.s32 %s20, 1
    %s22 = scalar_select %p19, %s20, %s21
    %p25 = pneg %p19
    %p26 = scmp.eq.s32.totalorder %s10, 3
    %p27 = por %p25, %p26
    %p28 = scmp.ne.s32.totalorder %s20, %s23
    %p29 = scmp.eq.s32.totalorder %s10, 0
    %p30 = por %p28, %p29
    %p31 = scmp.ne.s32.totalorder %s20, %s23
    %p32 = scmp.eq.s32.totalorder %s15, 3
    %p33 = por %p31, %p32
    %p34 = scmp.ne.s32.totalorder %s23, %s24
    %p35 = scmp.eq.s32.totalorder %s15, 0
    %p36 = por %p34, %p35
    %p37 = scmp.ne.s32.totalorder %s23, %s24
    %p38 = scmp.eq.s32.totalorder %s16, 3
    %p39 = por %p37, %p38
    %p41 = scmp.ne.s32.totalorder %s24, %s40
    %p42 = scmp.eq.s32.totalorder %s16, 0
    %p43 = por %p41, %p42
    %s45 = sadd.s32 %s44, 1
    %p48 = scmp.eq.s32.totalorder %s10, 3
    %p49 = scmp.ne.s32.totalorder %s44, %s46
    %p50 = scmp.eq.s32.totalorder %s10, 0
    %p51 = por %p49, %p50
    %p52 = scmp.ne.s32.totalorder %s44, %s46
    %p53 = scmp.eq.s32.totalorder %s15, 3
    %p54 = por %p52, %p53
    %p55 = scmp.ne.s32.totalorder %s46, %s47
    %p56 = scmp.eq.s32.totalorder %s15, 0
    %p57 = por %p55, %p56
    %p58 = scmp.ne.s32.totalorder %s46, %s47
    %p59 = scmp.eq.s32.totalorder %s16, 3
    %p60 = por %p58, %p59
    %p62 = scmp.ne.s32.totalorder %s47, %s61
    %p63 = scmp.eq.s32.totalorder %s16, 0
    %p64 = por %p62, %p63
    %s66 = sadd.s32 %s65, 1
    %p69 = scmp.eq.s32.totalorder %s10, 3
    %p70 = scmp.ne.s32.totalorder %s65, %s67
    %p71 = scmp.eq.s32.totalorder %s10, 0
    %p72 = por %p70, %p71
    %p73 = scmp.ne.s32.totalorder %s65, %s67
    %p74 = scmp.eq.s32.totalorder %s15, 3
    %p75 = por %p73, %p74
    %p76 = scmp.ne.s32.totalorder %s67, %s68
    %p77 = scmp.eq.s32.totalorder %s15, 0
    %p78 = por %p76, %p77
    %p79 = scmp.ne.s32.totalorder %s67, %s68
    %p80 = scmp.eq.s32.totalorder %s16, 3
    %p81 = por %p79, %p80
    %p83 = scmp.ne.s32.totalorder %s68, %s82
    %p84 = scmp.eq.s32.totalorder %s16, 0
    %p85 = por %p83, %p84
    %s87 = sadd.s32 %s86, 1
    %p90 = scmp.eq.s32.totalorder %s10, 3
    %p91 = scmp.ne.s32.totalorder %s86, %s88
    %p92 = scmp.eq.s32.totalorder %s10, 0
    %p93 = por %p91, %p92
    %p94 = scmp.ne.s32.totalorder %s86, %s88
    %p95 = scmp.eq.s32.totalorder %s15, 3
    %p96 = por %p94, %p95
    %p97 = scmp.ne.s32.totalorder %s88, %s89
    %p98 = scmp.eq.s32.totalorder %s15, 0
    %p99 = por %p97, %p98
    %p100 = scmp.ne.s32.totalorder %s88, %s89
    %p101 = scmp.eq.s32.totalorder %s16, 3
    %p102 = por %p100, %p101
    %p104 = scmp.ne.s32.totalorder %s89, %s103
    %p105 = scmp.eq.s32.totalorder %s16, 0
    %p106 = por %p104, %p105
    %s107 = ssub.s32 %s10, %s17
    %p108 = scmp.eq.s32.totalorder %s107, 0
    %s110 = sadd.s32 %s109, 1
    %s111 = scalar_select %p108, %s109, %s110
    %p114 = pneg %p108
    %p115 = scmp.eq.s32.totalorder %s10, 3
    %p116 = por %p114, %p115
    %p117 = scmp.ne.s32.totalorder %s109, %s112
    %p118 = scmp.eq.s32.totalorder %s10, 0
    %p119 = por %p117, %p118
    %p120 = scmp.ne.s32.totalorder %s109, %s112
    %p121 = scmp.eq.s32.totalorder %s15, 3
    %p122 = por %p120, %p121
    %p123 = scmp.ne.s32.totalorder %s112, %s113
    %p124 = scmp.eq.s32.totalorder %s15, 0
    %p125 = por %p123, %p124
    %p126 = scmp.ne.s32.totalorder %s112, %s113
    %p127 = scmp.eq.s32.totalorder %s16, 3
    %p128 = por %p126, %p127
    %p130 = scmp.ne.s32.totalorder %s113, %s129
    %p131 = scmp.eq.s32.totalorder %s16, 0
    %p132 = por %p130, %p131
    %p133 = scmp.le.s32.totalorder 1, %s10
    %p134 = scmp.lt.s32.totalorder %s10, 5
    %p135 = pnand %p133, %p134
    %p136 = pneg %p135
    // Predicated region
    $region9: #{graphconv_decoder.3} parent=5 // pred_check
      _
    $region10: #{graphconv_decoder.3} parent=5 // pred_check_branch
      %138 = sbr.rel (%p135) target = $region12
    $region11: #{graphconv_decoder.3} parent=5 // pred_region
      %s139 = ssub.s32 %s10, 1
      // Predicated region
      $region13: #{graphconv_decoder.3} parent=11 // pred_check
        %p140 = pneg %p57
      $region14: #{graphconv_decoder.3} parent=11 // pred_check_branch
        %142 = sbr.rel (%p140) target = $region16
      $region15: #{graphconv_decoder.3} parent=11 // pred_region
        _
      $region16: #{graphconv_decoder.3} parent=11 // pred_fallthru
        _
      // Predicated region
      $region17: #{graphconv_decoder.3} parent=11 // pred_check
        %p143 = pneg %p78
      $region18: #{graphconv_decoder.3} parent=11 // pred_check_branch
        %145 = sbr.rel (%p143) target = $region20
      $region19: #{graphconv_decoder.3} parent=11 // pred_region
        _
      $region20: #{graphconv_decoder.3} parent=11 // pred_fallthru
        _
      // Predicated region
      $region21: #{graphconv_decoder.3} parent=11 // pred_check
        %p146 = pneg %p99
      $region22: #{graphconv_decoder.3} parent=11 // pred_check_branch
        %148 = sbr.rel (%p146) target = $region24
      $region23: #{graphconv_decoder.3} parent=11 // pred_region
        _
      $region24: #{graphconv_decoder.3} parent=11 // pred_fallthru
        _
    $region12: #{graphconv_decoder.3} parent=5 // pred_fallthru
      _
    %p149 = scmp.lt.s32.totalorder %s10, 4
    // Predicated region
    $region25: #{graphconv_decoder.3} parent=5 // pred_check
      %p150 = pneg %p149
    $region26: #{graphconv_decoder.3} parent=5 // pred_check_branch
      %152 = sbr.rel (%p150) target = $region28
    $region27: #{graphconv_decoder.3} parent=5 // pred_region
      // Predicated region
      $region29: #{graphconv_decoder.3} parent=27 // pred_check
        %p153 = pneg %p30
      $region30: #{graphconv_decoder.3} parent=27 // pred_check_branch
        %155 = sbr.rel (%p153) target = $region32
      $region31: #{graphconv_decoder.3} parent=27 // pred_region
        %s156 = smul.u32 4, %s10
        %p157 = scmp.lt.s32.totalorder %s156, 15
        %s158 = scalar_select %p157, %s156, 15
        %s159 = smul.addr %s158, 4
        %s160 = scalar_lea.vmem %s0, %s159
        %s161 = smul.u32 4, %s10
      $region32: #{graphconv_decoder.3} parent=27 // pred_fallthru
        _
    $region28: #{graphconv_decoder.3} parent=5 // pred_fallthru
      _
    %p162 = scmp.le.s32.totalorder 1, %s10
    %p163 = scmp.lt.s32.totalorder %s10, 5
    %p164 = pnand %p162, %p163
    %p165 = pneg %p164
    // Predicated region
    $region33: #{graphconv_decoder.3} parent=5 // pred_check
      _
    $region34: #{graphconv_decoder.3} parent=5 // pred_check_branch
      %167 = sbr.rel (%p164) target = $region36
    $region35: #{graphconv_decoder.3} parent=5 // pred_region
      %s168 = ssub.s32 %s10, 1
      %s169 = smul.u32 4, %s15
      %p170 = scmp.lt.s32.totalorder %s169, 15
      %s171 = scalar_select %p170, %s169, 15
      %s172 = smul.addr %s171, 4
      %s173 = scalar_lea.vmem %s0, %s172
      %p174 = pneg %p36
      %p175 = pneg %p33
      %p176 = pneg %p57
      %p177 = pneg %p54
      %p178 = pneg %p78
      %p179 = pneg %p75
      %p180 = pneg %p99
      %p181 = pneg %p96
      %p182 = pneg %p125
      %p183 = pneg %p122
      %s184 = smul.u32 4, %s15
      %p185 = scmp.lt.s32.totalorder %s184, 15
      %s186 = scalar_select %p185, %s184, 15
      %s187 = smul.addr %s186, 8
      %s188 = scalar_lea.vmem %s4, %s187
      %s189 = smul.u32 4, %s15
      %p190 = scmp.lt.s32.totalorder %s189, 15
      %s191 = scalar_select %p190, %s189, 15
      %s192 = smul.addr %s191, 4
      %s193 = scalar_lea.vmem %s0, %s192
      %s194 = smul.u32 4, %s15
      %s195 = smul.u32 4, %s15
      %p196 = scmp.lt.s32.totalorder %s195, 15
      %s197 = scalar_select %p196, %s195, 15
      %s198 = smul.addr %s197, 8
      %s199 = scalar_lea.vmem %s4, %s198
      %s200 = smul.u32 4, %s15
      %s202 = smul.u32 %s15, 32
      %v203 = vld [vmem:[%s193] sm:$0xf]
      %v204 = vld [vmem:[%s193 + $0x4] sm:$0xf]
      %v205 = vld [vmem:[%s193 + $0x8] sm:$0xf]
      %v206 = vld [vmem:[%s193 + $0xc] sm:$0xf]
      %v207 = vld [vmem:[%s1] sm:$0xf]
      %v208 = vld [vmem:[%s1 + $0x4] sm:$0xf]
      %v209 = vld [vmem:[%s1 + $0x8] sm:$0xf]
      %v210 = vld [vmem:[%s1 + $0xc] sm:$0xf]
      %v211 = vld [vmem:[%s1 + $0x10] sm:$0xf]
      %v212 = vld [vmem:[%s1 + $0x14] sm:$0xf]
      %v213 = vld [vmem:[%s1 + $0x18] sm:$0xf]
      %v214 = vld [vmem:[%s1 + $0x1c] sm:$0xf]
      %v215 = vld [vmem:[%s1 + $0x20] sm:$0xf]
      %v216 = vld [vmem:[%s1 + $0x24] sm:$0xf]
      %v217 = vld [vmem:[%s1 + $0x28] sm:$0xf]
      %v218 = vld [vmem:[%s1 + $0x2c] sm:$0xf]
      %v219 = vld [vmem:[%s1 + $0x30] sm:$0xf]
      %v220 = vld [vmem:[%s1 + $0x34] sm:$0xf]
      %v221 = vld [vmem:[%s1 + $0x38] sm:$0xf]
      %v222 = vld [vmem:[%s1 + $0x3c] sm:$0xf]
      %v227 = vunpack.c.l.b16 %v203
      %v228 = vunpack.c.l.b16 %v204
      %v229 = vunpack.c.l.b16 %v205
      %v230 = vunpack.c.l.b16 %v206
      %v231 = vpack.c.b16 %v228, %v227
      %v232 = vpack.c.b16 %v230, %v229
      %v251 = vunpack.c.l.b16 %v207
      %v252 = vunpack.c.l.b16 %v208
      %v253 = vunpack.c.l.b16 %v209
      %v254 = vunpack.c.l.b16 %v210
      %v255 = vunpack.c.l.b16 %v211
      %v256 = vunpack.c.l.b16 %v212
      %v257 = vunpack.c.l.b16 %v213
      %v258 = vunpack.c.l.b16 %v214
      %v259 = vunpack.c.l.b16 %v215
      %v260 = vunpack.c.l.b16 %v216
      %v261 = vunpack.c.l.b16 %v217
      %v262 = vunpack.c.l.b16 %v218
      %v263 = vunpack.c.l.b16 %v219
      %v264 = vunpack.c.l.b16 %v220
      %v265 = vunpack.c.l.b16 %v221
      %v266 = vunpack.c.l.b16 %v222
      %v267 = vpack.c.b16 %v252, %v251
      %v268 = vpack.c.b16 %v254, %v253
      %v269 = vpack.c.b16 %v256, %v255
      %v270 = vpack.c.b16 %v258, %v257
      %v271 = vpack.c.b16 %v260, %v259
      %v272 = vpack.c.b16 %v262, %v261
      %v273 = vpack.c.b16 %v264, %v263
      %v274 = vpack.c.b16 %v266, %v265
      %283 = vmatprep.subr.bf16.mxu0 0
      %284 = vmatpush1.bf16.msra.mxu0 %v267
      %285 = vmatprep.subr.bf16.mxu0 0
      %286 = vmatpush1.bf16.msra.mxu0 %v268
      %287 = vmatprep.subr.bf16.mxu0 0
      %288 = vmatpush1.bf16.msra.mxu0 %v269
      %289 = vmatprep.subr.bf16.mxu0 0
      %290 = vmatpush1.bf16.msra.mxu0 %v270
      %291 = vmatprep.subr.bf16.mxu0 0
      %292 = vmatpush1.bf16.msra.mxu0 %v271
      %293 = vmatprep.subr.bf16.mxu0 0
      %294 = vmatpush1.bf16.msra.mxu0 %v272
      %295 = vmatprep.subr.bf16.mxu0 0
      %296 = vmatpush1.bf16.msra.mxu0 %v273
      %297 = vmatprep.subr.bf16.mxu0 0
      %298 = vmatpush1.bf16.msra.mxu0 %v274
      %299 = vmatprep.subr.bf16.mxu0 0
      %300 = vmatpush1.bf16.msra.mxu0 0
      %301 = vmatprep.subr.bf16.mxu0 0
      %302 = vmatpush1.bf16.msra.mxu0 0
      %303 = vmatprep.subr.bf16.mxu0 0
      %304 = vmatpush1.bf16.msra.mxu0 0
      %305 = vmatprep.subr.bf16.mxu0 0
      %306 = vmatpush1.bf16.msra.mxu0 0
      %307 = vmatprep.subr.bf16.mxu0 0
      %308 = vmatpush1.bf16.msra.mxu0 0
      %309 = vmatprep.subr.bf16.mxu0 0
      %310 = vmatpush1.bf16.msra.mxu0 0
      %311 = vmatprep.subr.bf16.mxu0 0
      %312 = vmatpush1.bf16.msra.mxu0 0
      %313 = vmatprep.subr.bf16.mxu0 0
      %314 = vmatpush1.bf16.msra.mxu0 0
      %315 = vmatprep.mubr.bf16.mxu0 0
      %316 = vmatmul.mubr.bf16.gmra.mrb[0].mxu0 %v231
      %v317 = vpop.f32.mrb[0].mxu0
      %v318 = vadd.f32 0.0, %v317
      %v319 = vpop.f32.mrb[0].mxu0
      %v320 = vpop.f32.mrb[0].mxu0
      %v321 = vadd.f32 0.0, %v320
      %v322 = vpop.f32.mrb[0].mxu0
      %323 = vmatprep.mubr.bf16.mxu0 0
      %324 = vmatmul.mubr.bf16.gmra.mrb[0].mxu0 %v232
      %v325 = vpop.f32.mrb[0].mxu0
      %v326 = vadd.f32 0.0, %v325
      %v327 = vpop.f32.mrb[0].mxu0
      %v328 = vpop.f32.mrb[0].mxu0
      %v329 = vadd.f32 0.0, %v328
      %v330 = vpop.f32.mrb[0].mxu0
      %331 = vdwg.mxu0
      %s332 = sshra.s32 %s202, 3
      %s333 = sand.u32 %s202, 7
      %s334 = smul.addr %s332, 4
      %s335 = scalar_lea.vmem %s1, %s334
      %v336 = vld [vmem:[%s335] sm:$0xf]
      %v337 = vld [vmem:[%s335 + $0x4] sm:$0xf]
      %v338 = vld [vmem:[%s335 + $0x8] sm:$0xf]
      %v339 = vld [vmem:[%s335 + $0xc] sm:$0xf]
      %v340 = vpack.c.bf16 %v321, %v318
      %v341 = vpack.c.bf16 %v329, %v326
      %v346 = vunpack.c.l.b16 %v336
      %v347 = vunpack.c.l.b16 %v337
      %v348 = vunpack.c.l.b16 %v338
      %v349 = vunpack.c.l.b16 %v339
      %v350 = vpack.c.b16 %v347, %v346
      %v351 = vpack.c.b16 %v349, %v348
      %v354 = vld [vmem:[%s2] sm:$0xf]
      %v355 = vld [vmem:[%s2 + $0x4] sm:$0xf]
      %v356 = vld [vmem:[%s2 + $0x8] sm:$0xf]
      %v357 = vld [vmem:[%s2 + $0xc] sm:$0xf]
      %v358 = vld [vmem:[%s2 + $0x10] sm:$0xf]
      %v359 = vld [vmem:[%s2 + $0x14] sm:$0xf]
      %v360 = vld [vmem:[%s2 + $0x18] sm:$0xf]
      %v361 = vld [vmem:[%s2 + $0x1c] sm:$0xf]
      %v362 = vld [vmem:[%s2 + $0x20] sm:$0xf]
      %v363 = vld [vmem:[%s2 + $0x24] sm:$0xf]
      %v364 = vld [vmem:[%s2 + $0x28] sm:$0xf]
      %v365 = vld [vmem:[%s2 + $0x2c] sm:$0xf]
      %v366 = vld [vmem:[%s2 + $0x30] sm:$0xf]
      %v367 = vld [vmem:[%s2 + $0x34] sm:$0xf]
      %v368 = vld [vmem:[%s2 + $0x38] sm:$0xf]
      %v369 = vld [vmem:[%s2 + $0x3c] sm:$0xf]
      %v370 = vld [vmem:[%s2 + $0x40] sm:$0xf]
      %v371 = vld [vmem:[%s2 + $0x44] sm:$0xf]
      %v372 = vld [vmem:[%s2 + $0x48] sm:$0xf]
      %v373 = vld [vmem:[%s2 + $0x4c] sm:$0xf]
      %v374 = vld [vmem:[%s2 + $0x50] sm:$0xf]
      %v375 = vld [vmem:[%s2 + $0x54] sm:$0xf]
      %v376 = vld [vmem:[%s2 + $0x58] sm:$0xf]
      %v377 = vld [vmem:[%s2 + $0x5c] sm:$0xf]
      %v378 = vld [vmem:[%s2 + $0x60] sm:$0xf]
      %v379 = vld [vmem:[%s2 + $0x64] sm:$0xf]
      %v380 = vld [vmem:[%s2 + $0x68] sm:$0xf]
      %v381 = vld [vmem:[%s2 + $0x6c] sm:$0xf]
      %v382 = vld [vmem:[%s2 + $0x70] sm:$0xf]
      %v383 = vld [vmem:[%s2 + $0x74] sm:$0xf]
      %v384 = vld [vmem:[%s2 + $0x78] sm:$0xf]
      %v385 = vld [vmem:[%s2 + $0x7c] sm:$0xf]
      %v386 = vld [vmem:[%s3] sm:$0x1]
      %v388 = vlaneseq
      %v389 = vshrl.u32 %v388, 7
      %v390 = vsub.s32 0, %v389
      %v391 = vrot.slane %v386, %v390
      %v425 = vunpack.c.l.b16 %v354
      %v426 = vunpack.c.l.b16 %v355
      %v427 = vunpack.c.l.b16 %v356
      %v428 = vunpack.c.l.b16 %v357
      %v429 = vunpack.c.l.b16 %v358
      %v430 = vunpack.c.l.b16 %v359
      %v431 = vunpack.c.l.b16 %v360
      %v432 = vunpack.c.l.b16 %v361
      %v433 = vunpack.c.l.b16 %v362
      %v434 = vunpack.c.l.b16 %v363
      %v435 = vunpack.c.l.b16 %v364
      %v436 = vunpack.c.l.b16 %v365
      %v437 = vunpack.c.l.b16 %v366
      %v438 = vunpack.c.l.b16 %v367
      %v439 = vunpack.c.l.b16 %v368
      %v440 = vunpack.c.l.b16 %v369
      %v441 = vunpack.c.l.b16 %v370
      %v442 = vunpack.c.l.b16 %v371
      %v443 = vunpack.c.l.b16 %v372
      %v444 = vunpack.c.l.b16 %v373
      %v445 = vunpack.c.l.b16 %v374
      %v446 = vunpack.c.l.b16 %v375
      %v447 = vunpack.c.l.b16 %v376
      %v448 = vunpack.c.l.b16 %v377
      %v449 = vunpack.c.l.b16 %v378
      %v450 = vunpack.c.l.b16 %v379
      %v451 = vunpack.c.l.b16 %v380
      %v452 = vunpack.c.l.b16 %v381
      %v453 = vunpack.c.l.b16 %v382
      %v454 = vunpack.c.l.b16 %v383
      %v455 = vunpack.c.l.b16 %v384
      %v456 = vunpack.c.l.b16 %v385
      %v457 = vpack.c.b16 %v426, %v425
      %v458 = vpack.c.b16 %v428, %v427
      %v459 = vpack.c.b16 %v430, %v429
      %v460 = vpack.c.b16 %v432, %v431
      %v461 = vpack.c.b16 %v434, %v433
      %v462 = vpack.c.b16 %v436, %v435
      %v463 = vpack.c.b16 %v438, %v437
      %v464 = vpack.c.b16 %v440, %v439
      %v465 = vpack.c.b16 %v442, %v441
      %v466 = vpack.c.b16 %v444, %v443
      %v467 = vpack.c.b16 %v446, %v445
      %v468 = vpack.c.b16 %v448, %v447
      %v469 = vpack.c.b16 %v450, %v449
      %v470 = vpack.c.b16 %v452, %v451
      %v471 = vpack.c.b16 %v454, %v453
      %v472 = vpack.c.b16 %v456, %v455
      %489 = vmatprep.subr.bf16.mxu0 0
      %490 = vmatpush1.bf16.msra.mxu0 %v457
      %491 = vmatprep.subr.bf16.mxu0 0
      %492 = vmatpush1.bf16.msra.mxu0 %v458
      %493 = vmatprep.subr.bf16.mxu0 0
      %494 = vmatpush1.bf16.msra.mxu0 %v459
      %495 = vmatprep.subr.bf16.mxu0 0
      %496 = vmatpush1.bf16.msra.mxu0 %v460
      %497 = vmatprep.subr.bf16.mxu0 0
      %498 = vmatpush1.bf16.msra.mxu0 %v461
      %499 = vmatprep.subr.bf16.mxu0 0
      %500 = vmatpush1.bf16.msra.mxu0 %v462
      %501 = vmatprep.subr.bf16.mxu0 0
      %502 = vmatpush1.bf16.msra.mxu0 %v463
      %503 = vmatprep.subr.bf16.mxu0 0
      %504 = vmatpush1.bf16.msra.mxu0 %v464
      %505 = vmatprep.subr.bf16.mxu0 0
      %506 = vmatpush1.bf16.msra.mxu0 %v465
      %507 = vmatprep.subr.bf16.mxu0 0
      %508 = vmatpush1.bf16.msra.mxu0 %v466
      %509 = vmatprep.subr.bf16.mxu0 0
      %510 = vmatpush1.bf16.msra.mxu0 %v467
      %511 = vmatprep.subr.bf16.mxu0 0
      %512 = vmatpush1.bf16.msra.mxu0 %v468
      %513 = vmatprep.subr.bf16.mxu0 0
      %514 = vmatpush1.bf16.msra.mxu0 %v469
      %515 = vmatprep.subr.bf16.mxu0 0
      %516 = vmatpush1.bf16.msra.mxu0 %v470
      %517 = vmatprep.subr.bf16.mxu0 0
      %518 = vmatpush1.bf16.msra.mxu0 %v471
      %519 = vmatprep.subr.bf16.mxu0 0
      %520 = vmatpush1.bf16.msra.mxu0 %v472
      %521 = vmatprep.mubr.bf16.mxu0 %v350
      %522 = vmatmul.mubr.bf16.gmra.mrb[0].mxu0 %v340
      %v523 = vpop.f32.mrb[0].mxu0
      %v524 = vadd.f32 %v391, %v523
      %v525 = vpop.f32.mrb[0].mxu0
      %v526 = vpop.f32.mrb[0].mxu0
      %v527 = vadd.f32 %v391, %v526
      %v528 = vpop.f32.mrb[0].mxu0
      %529 = vmatprep.mubr.bf16.mxu0 %v351
      %530 = vmatmul.mubr.bf16.gmra.mrb[0].mxu0 %v341
      %v531 = vpop.f32.mrb[0].mxu0
      %v532 = vadd.f32 %v391, %v531
      %v533 = vpop.f32.mrb[0].mxu0
      %v534 = vpop.f32.mrb[0].mxu0
      %v535 = vadd.f32 %v391, %v534
      %v536 = vpop.f32.mrb[0].mxu0
      %537 = vdwg.mxu0
      %538 = vst [vmem:[%s199] sm:$0xff] %v524
      %539 = vst [vmem:[%s199 + $0x8] sm:$0xff] %v527
      %540 = vst [vmem:[%s199 + $0x10] sm:$0xff] %v532
      %541 = vst [vmem:[%s199 + $0x18] sm:$0xff] %v535
      %s542 = smul.u32 4, %s15
      %p543 = scmp.lt.s32.totalorder %s542, 15
      %s544 = scalar_select %p543, %s542, 15
      %s545 = smul.addr %s544, 8
      %s546 = scalar_lea.vmem %s4, %s545
      // Predicated region
      $region37: #{graphconv_decoder.3} parent=35 // pred_check
        %p547 = pneg %p122
      $region38: #{graphconv_decoder.3} parent=35 // pred_check_branch
        %549 = sbr.rel (%p547) target = $region40
      $region39: #{graphconv_decoder.3} parent=35 // pred_region
        %s550 = smul.u32 4, %s15
      $region40: #{graphconv_decoder.3} parent=35 // pred_fallthru
        _
    $region36: #{graphconv_decoder.3} parent=5 // pred_fallthru
      _
    %p551 = scmp.le.s32.totalorder 2, %s10
    // Predicated region
    $region41: #{graphconv_decoder.3} parent=5 // pred_check
      %p552 = pneg %p551
    $region42: #{graphconv_decoder.3} parent=5 // pred_check_branch
      %554 = sbr.rel (%p552) target = $region44
    $region43: #{graphconv_decoder.3} parent=5 // pred_region
      %s555 = ssub.s32 %s10, 2
      // Predicated region
      $region45: #{graphconv_decoder.3} parent=43 // pred_check
        %p556 = pneg %p128
      $region46: #{graphconv_decoder.3} parent=43 // pred_check_branch
        %558 = sbr.rel (%p556) target = $region48
      $region47: #{graphconv_decoder.3} parent=43 // pred_region
        %s559 = smul.u32 4, %s16
        %p560 = scmp.lt.s32.totalorder %s559, 15
        %s561 = scalar_select %p560, %s559, 15
        %s562 = smul.addr %s561, 8
        %s563 = scalar_lea.vmem %s4, %s562
      $region48: #{graphconv_decoder.3} parent=43 // pred_fallthru
        _
    $region44: #{graphconv_decoder.3} parent=5 // pred_fallthru
      _
  $region6: #{graphconv_decoder.3} parent=0 // loop_footer
    %s14 = sadd.s32 1, %s10
  $region7: #{graphconv_decoder.3} parent=0 // loop_footer_branch
    %9 = sbr.rel target = $region3
  $region8: #{graphconv_decoder.3} parent=0 // loop_exit
    _

// kernel: graphconv_decoder.2
$region0: #{graphconv_decoder.2}
  #allocation0 [shape = 'u32[]', space=smem, size = 0x4, offset = 0x4, fixed_abs, tag = 'smem constant byte address 0x4 - core index']
  #allocation1 [shape = 'u32[144,128]{1,0:T(1,128)}', space=vmem, size = 0x12000, scoped, tag = 'internal scratch']
  %s0 = inlined_call_operand.vmem [shape: bf16[128,128], index: 0, kind: input, shape index: {}]
  %s1 = inlined_call_operand.vmem [shape: bf16[128,128], index: 1, kind: input, shape index: {}]
  %s2 = inlined_call_operand.vmem [shape: bf16[256,128], index: 2, kind: input, shape index: {}]
  %s3 = inlined_call_operand.vmem [shape: f32[1,128], index: 3, kind: input, shape index: {}]
  %s4 = inlined_call_operand.vmem [shape: bf16[128,128], index: 4, kind: output, shape index: {}]
  %s5 = sld [smem:[#allocation0]]
  $region49: #{graphconv_decoder.2} parent=0
    _
  %s7 = ssub.s32 1, %s5
  %s8 = scalar_select 0, %s7, %s5
  loop: start=0, step=1, limit=6
  $region2: #{graphconv_decoder.2} parent=0 // loop_pre_header
    _
  $region3: #{graphconv_decoder.2} parent=0 // loop_header
    %s10 = sphi 0, %s14
    %p11 = scmp.ge.s32.totalorder %s10, 6
    %s20 = sphi 0, %s22
    %s23 = sphi 0, %s20
    %s24 = sphi 0, %s23
    %s40 = sphi 0, %s24
    %s44 = sphi 0, %s44
    %s46 = sphi 0, %s44
    %s47 = sphi 0, %s46
    %s61 = sphi 0, %s47
    %s65 = sphi 0, %s65
    %s67 = sphi 0, %s65
    %s68 = sphi 0, %s67
    %s82 = sphi 0, %s68
    %s86 = sphi 0, %s86
    %s88 = sphi 0, %s86
    %s89 = sphi 0, %s88
    %s103 = sphi 0, %s89
    %s109 = sphi 0, %s111
    %s112 = sphi 0, %s109
    %s113 = sphi 0, %s112
    %s129 = sphi 0, %s113
  $region4: #{graphconv_decoder.2} parent=0 // loop_header_branch
    %13 = sbr.rel (%p11) target = $region8
  $region5: #{graphconv_decoder.2} parent=0 // loop_body
    %s15 = ssub.s32 %s10, 1
    %s16 = ssub.s32 %s10, 2
    %s17 = sadd.s32 %s10, 1
    %s18 = ssub.s32 %s10, %s17
    %p19 = scmp.eq.s32.totalorder %s18, 0
    %s21 = sadd.s32 %s20, 1
    %s22 = scalar_select %p19, %s20, %s21
    %p25 = pneg %p19
    %p26 = scmp.eq.s32.totalorder %s10, 3
    %p27 = por %p25, %p26
    %p28 = scmp.ne.s32.totalorder %s20, %s23
    %p29 = scmp.eq.s32.totalorder %s10, 0
    %p30 = por %p28, %p29
    %p31 = scmp.ne.s32.totalorder %s20, %s23
    %p32 = scmp.eq.s32.totalorder %s15, 3
    %p33 = por %p31, %p32
    %p34 = scmp.ne.s32.totalorder %s23, %s24
    %p35 = scmp.eq.s32.totalorder %s15, 0
    %p36 = por %p34, %p35
    %p37 = scmp.ne.s32.totalorder %s23, %s24
    %p38 = scmp.eq.s32.totalorder %s16, 3
    %p39 = por %p37, %p38
    %p41 = scmp.ne.s32.totalorder %s24, %s40
    %p42 = scmp.eq.s32.totalorder %s16, 0
    %p43 = por %p41, %p42
    %s45 = sadd.s32 %s44, 1
    %p48 = scmp.eq.s32.totalorder %s10, 3
    %p49 = scmp.ne.s32.totalorder %s44, %s46
    %p50 = scmp.eq.s32.totalorder %s10, 0
    %p51 = por %p49, %p50
    %p52 = scmp.ne.s32.totalorder %s44, %s46
    %p53 = scmp.eq.s32.totalorder %s15, 3
    %p54 = por %p52, %p53
    %p55 = scmp.ne.s32.totalorder %s46, %s47
    %p56 = scmp.eq.s32.totalorder %s15, 0
    %p57 = por %p55, %p56
    %p58 = scmp.ne.s32.totalorder %s46, %s47
    %p59 = scmp.eq.s32.totalorder %s16, 3
    %p60 = por %p58, %p59
    %p62 = scmp.ne.s32.totalorder %s47, %s61
    %p63 = scmp.eq.s32.totalorder %s16, 0
    %p64 = por %p62, %p63
    %s66 = sadd.s32 %s65, 1
    %p69 = scmp.eq.s32.totalorder %s10, 3
    %p70 = scmp.ne.s32.totalorder %s65, %s67
    %p71 = scmp.eq.s32.totalorder %s10, 0
    %p72 = por %p70, %p71
    %p73 = scmp.ne.s32.totalorder %s65, %s67
    %p74 = scmp.eq.s32.totalorder %s15, 3
    %p75 = por %p73, %p74
    %p76 = scmp.ne.s32.totalorder %s67, %s68
    %p77 = scmp.eq.s32.totalorder %s15, 0
    %p78 = por %p76, %p77
    %p79 = scmp.ne.s32.totalorder %s67, %s68
    %p80 = scmp.eq.s32.totalorder %s16, 3
    %p81 = por %p79, %p80
    %p83 = scmp.ne.s32.totalorder %s68, %s82
    %p84 = scmp.eq.s32.totalorder %s16, 0
    %p85 = por %p83, %p84
    %s87 = sadd.s32 %s86, 1
    %p90 = scmp.eq.s32.totalorder %s10, 3
    %p91 = scmp.ne.s32.totalorder %s86, %s88
    %p92 = scmp.eq.s32.totalorder %s10, 0
    %p93 = por %p91, %p92
    %p94 = scmp.ne.s32.totalorder %s86, %s88
    %p95 = scmp.eq.s32.totalorder %s15, 3
    %p96 = por %p94, %p95
    %p97 = scmp.ne.s32.totalorder %s88, %s89
    %p98 = scmp.eq.s32.totalorder %s15, 0
    %p99 = por %p97, %p98
    %p100 = scmp.ne.s32.totalorder %s88, %s89
    %p101 = scmp.eq.s32.totalorder %s16, 3
    %p102 = por %p100, %p101
    %p104 = scmp.ne.s32.totalorder %s89, %s103
    %p105 = scmp.eq.s32.totalorder %s16, 0
    %p106 = por %p104, %p105
    %s107 = ssub.s32 %s10, %s17
    %p108 = scmp.eq.s32.totalorder %s107, 0
    %s110 = sadd.s32 %s109, 1
    %s111 = scalar_select %p108, %s109, %s110
    %p114 = pneg %p108
    %p115 = scmp.eq.s32.totalorder %s10, 3
    %p116 = por %p114, %p115
    %p117 = scmp.ne.s32.totalorder %s109, %s112
    %p118 = scmp.eq.s32.totalorder %s10, 0
    %p119 = por %p117, %p118
    %p120 = scmp.ne.s32.totalorder %s109, %s112
    %p121 = scmp.eq.s32.totalorder %s15, 3
    %p122 = por %p120, %p121
    %p123 = scmp.ne.s32.totalorder %s112, %s113
    %p124 = scmp.eq.s32.totalorder %s15, 0
    %p125 = por %p123, %p124
    %p126 = scmp.ne.s32.totalorder %s112, %s113
    %p127 = scmp.eq.s32.totalorder %s16, 3
    %p128 = por %p126, %p127
    %p130 = scmp.ne.s32.totalorder %s113, %s129
    %p131 = scmp.eq.s32.totalorder %s16, 0
    %p132 = por %p130, %p131
    %p133 = scmp.le.s32.totalorder 1, %s10
    %p134 = scmp.lt.s32.totalorder %s10, 5
    %p135 = pnand %p133, %p134
    %p136 = pneg %p135
    // Predicated region
    $region9: #{graphconv_decoder.2} parent=5 // pred_check
      _
    $region10: #{graphconv_decoder.2} parent=5 // pred_check_branch
      %138 = sbr.rel (%p135) target = $region12
    $region11: #{graphconv_decoder.2} parent=5 // pred_region
      %s139 = ssub.s32 %s10, 1
      // Predicated region
      $region13: #{graphconv_decoder.2} parent=11 // pred_check
        %p140 = pneg %p57
      $region14: #{graphconv_decoder.2} parent=11 // pred_check_branch
        %142 = sbr.rel (%p140) target = $region16
      $region15: #{graphconv_decoder.2} parent=11 // pred_region
        _
      $region16: #{graphconv_decoder.2} parent=11 // pred_fallthru
        _
      // Predicated region
      $region17: #{graphconv_decoder.2} parent=11 // pred_check
        %p143 = pneg %p78
      $region18: #{graphconv_decoder.2} parent=11 // pred_check_branch
        %145 = sbr.rel (%p143) target = $region20
      $region19: #{graphconv_decoder.2} parent=11 // pred_region
        _
      $region20: #{graphconv_decoder.2} parent=11 // pred_fallthru
        _
      // Predicated region
      $region21: #{graphconv_decoder.2} parent=11 // pred_check
        %p146 = pneg %p99
      $region22: #{graphconv_decoder.2} parent=11 // pred_check_branch
        %148 = sbr.rel (%p146) target = $region24
      $region23: #{graphconv_decoder.2} parent=11 // pred_region
        _
      $region24: #{graphconv_decoder.2} parent=11 // pred_fallthru
        _
    $region12: #{graphconv_decoder.2} parent=5 // pred_fallthru
      _
    %p149 = scmp.lt.s32.totalorder %s10, 4
    // Predicated region
    $region25: #{graphconv_decoder.2} parent=5 // pred_check
      %p150 = pneg %p149
    $region26: #{graphconv_decoder.2} parent=5 // pred_check_branch
      %152 = sbr.rel (%p150) target = $region28
    $region27: #{graphconv_decoder.2} parent=5 // pred_region
      // Predicated region
      $region29: #{graphconv_decoder.2} parent=27 // pred_check
        %p153 = pneg %p30
      $region30: #{graphconv_decoder.2} parent=27 // pred_check_branch
        %155 = sbr.rel (%p153) target = $region32
      $region31: #{graphconv_decoder.2} parent=27 // pred_region
        %s156 = smul.u32 4, %s10
        %p157 = scmp.lt.s32.totalorder %s156, 15
        %s158 = scalar_select %p157, %s156, 15
        %s159 = smul.addr %s158, 4
        %s160 = scalar_lea.vmem %s0, %s159
        %s161 = smul.u32 4, %s10
      $region32: #{graphconv_decoder.2} parent=27 // pred_fallthru
        _
    $region28: #{graphconv_decoder.2} parent=5 // pred_fallthru
      _
    %p162 = scmp.le.s32.totalorder 1, %s10
    %p163 = scmp.lt.s32.totalorder %s10, 5
    %p164 = pnand %p162, %p163
    %p165 = pneg %p164
    // Predicated region
    $region33: #{graphconv_decoder.2} parent=5 // pred_check
      _
    $region34: #{graphconv_decoder.2} parent=5 // pred_check_branch
      %167 = sbr.rel (%p164) target = $region36
    $region35: #{graphconv_decoder.2} parent=5 // pred_region
      %s168 = ssub.s32 %s10, 1
      %s169 = smul.u32 4, %s15
      %p170 = scmp.lt.s32.totalorder %s169, 15
      %s171 = scalar_select %p170, %s169, 15
      %s172 = smul.addr %s171, 4
      %s173 = scalar_lea.vmem %s0, %s172
      %p174 = pneg %p36
      %p175 = pneg %p33
      %p176 = pneg %p57
      %p177 = pneg %p54
      %p178 = pneg %p78
      %p179 = pneg %p75
      %p180 = pneg %p99
      %p181 = pneg %p96
      %p182 = pneg %p125
      %p183 = pneg %p122
      %s184 = smul.u32 4, %s15
      %p185 = scmp.lt.s32.totalorder %s184, 15
      %s186 = scalar_select %p185, %s184, 15
      %s187 = smul.addr %s186, 4
      %s188 = scalar_lea.vmem %s4, %s187
      %s189 = smul.u32 4, %s15
      %p190 = scmp.lt.s32.totalorder %s189, 15
      %s191 = scalar_select %p190, %s189, 15
      %s192 = smul.addr %s191, 4
      %s193 = scalar_lea.vmem %s0, %s192
      %s194 = smul.u32 4, %s15
      %s195 = smul.u32 4, %s15
      %p196 = scmp.lt.s32.totalorder %s195, 15
      %s197 = scalar_select %p196, %s195, 15
      %s198 = smul.addr %s197, 4
      %s199 = scalar_lea.vmem %s4, %s198
      %s200 = smul.u32 4, %s15
      %s202 = smul.u32 %s15, 32
      %v203 = vld [vmem:[%s193] sm:$0xf]
      %v204 = vld [vmem:[%s193 + $0x4] sm:$0xf]
      %v205 = vld [vmem:[%s193 + $0x8] sm:$0xf]
      %v206 = vld [vmem:[%s193 + $0xc] sm:$0xf]
      %v207 = vld [vmem:[%s1] sm:$0xf]
      %v208 = vld [vmem:[%s1 + $0x4] sm:$0xf]
      %v209 = vld [vmem:[%s1 + $0x8] sm:$0xf]
      %v210 = vld [vmem:[%s1 + $0xc] sm:$0xf]
      %v211 = vld [vmem:[%s1 + $0x10] sm:$0xf]
      %v212 = vld [vmem:[%s1 + $0x14] sm:$0xf]
      %v213 = vld [vmem:[%s1 + $0x18] sm:$0xf]
      %v214 = vld [vmem:[%s1 + $0x1c] sm:$0xf]
      %v215 = vld [vmem:[%s1 + $0x20] sm:$0xf]
      %v216 = vld [vmem:[%s1 + $0x24] sm:$0xf]
      %v217 = vld [vmem:[%s1 + $0x28] sm:$0xf]
      %v218 = vld [vmem:[%s1 + $0x2c] sm:$0xf]
      %v219 = vld [vmem:[%s1 + $0x30] sm:$0xf]
      %v220 = vld [vmem:[%s1 + $0x34] sm:$0xf]
      %v221 = vld [vmem:[%s1 + $0x38] sm:$0xf]
      %v222 = vld [vmem:[%s1 + $0x3c] sm:$0xf]
      %v227 = vunpack.c.l.b16 %v203
      %v228 = vunpack.c.l.b16 %v204
      %v229 = vunpack.c.l.b16 %v205
      %v230 = vunpack.c.l.b16 %v206
      %v231 = vpack.c.b16 %v228, %v227
      %v232 = vpack.c.b16 %v230, %v229
      %v251 = vunpack.c.l.b16 %v207
      %v252 = vunpack.c.l.b16 %v208
      %v253 = vunpack.c.l.b16 %v209
      %v254 = vunpack.c.l.b16 %v210
      %v255 = vunpack.c.l.b16 %v211
      %v256 = vunpack.c.l.b16 %v212
      %v257 = vunpack.c.l.b16 %v213
      %v258 = vunpack.c.l.b16 %v214
      %v259 = vunpack.c.l.b16 %v215
      %v260 = vunpack.c.l.b16 %v216
      %v261 = vunpack.c.l.b16 %v217
      %v262 = vunpack.c.l.b16 %v218
      %v263 = vunpack.c.l.b16 %v219
      %v264 = vunpack.c.l.b16 %v220
      %v265 = vunpack.c.l.b16 %v221
      %v266 = vunpack.c.l.b16 %v222
      %v267 = vpack.c.b16 %v252, %v251
      %v268 = vpack.c.b16 %v254, %v253
      %v269 = vpack.c.b16 %v256, %v255
      %v270 = vpack.c.b16 %v258, %v257
      %v271 = vpack.c.b16 %v260, %v259
      %v272 = vpack.c.b16 %v262, %v261
      %v273 = vpack.c.b16 %v264, %v263
      %v274 = vpack.c.b16 %v266, %v265
      %283 = vmatprep.subr.bf16.mxu0 0
      %284 = vmatpush1.bf16.msra.mxu0 %v267
      %285 = vmatprep.subr.bf16.mxu0 0
      %286 = vmatpush1.bf16.msra.mxu0 %v268
      %287 = vmatprep.subr.bf16.mxu0 0
      %288 = vmatpush1.bf16.msra.mxu0 %v269
      %289 = vmatprep.subr.bf16.mxu0 0
      %290 = vmatpush1.bf16.msra.mxu0 %v270
      %291 = vmatprep.subr.bf16.mxu0 0
      %292 = vmatpush1.bf16.msra.mxu0 %v271
      %293 = vmatprep.subr.bf16.mxu0 0
      %294 = vmatpush1.bf16.msra.mxu0 %v272
      %295 = vmatprep.subr.bf16.mxu0 0
      %296 = vmatpush1.bf16.msra.mxu0 %v273
      %297 = vmatprep.subr.bf16.mxu0 0
      %298 = vmatpush1.bf16.msra.mxu0 %v274
      %299 = vmatprep.subr.bf16.mxu0 0
      %300 = vmatpush1.bf16.msra.mxu0 0
      %301 = vmatprep.subr.bf16.mxu0 0
      %302 = vmatpush1.bf16.msra.mxu0 0
      %303 = vmatprep.subr.bf16.mxu0 0
      %304 = vmatpush1.bf16.msra.mxu0 0
      %305 = vmatprep.subr.bf16.mxu0 0
      %306 = vmatpush1.bf16.msra.mxu0 0
      %307 = vmatprep.subr.bf16.mxu0 0
      %308 = vmatpush1.bf16.msra.mxu0 0
      %309 = vmatprep.subr.bf16.mxu0 0
      %310 = vmatpush1.bf16.msra.mxu0 0
      %311 = vmatprep.subr.bf16.mxu0 0
      %312 = vmatpush1.bf16.msra.mxu0 0
      %313 = vmatprep.subr.bf16.mxu0 0
      %314 = vmatpush1.bf16.msra.mxu0 0
      %315 = vmatprep.mubr.bf16.mxu0 0
      %316 = vmatmul.mubr.bf16.gmra.mrb[0].mxu0 %v231
      %v317 = vpop.f32.mrb[0].mxu0
      %v318 = vadd.f32 0.0, %v317
      %v319 = vpop.f32.mrb[0].mxu0
      %v320 = vpop.f32.mrb[0].mxu0
      %v321 = vadd.f32 0.0, %v320
      %v322 = vpop.f32.mrb[0].mxu0
      %323 = vmatprep.mubr.bf16.mxu0 0
      %324 = vmatmul.mubr.bf16.gmra.mrb[0].mxu0 %v232
      %v325 = vpop.f32.mrb[0].mxu0
      %v326 = vadd.f32 0.0, %v325
      %v327 = vpop.f32.mrb[0].mxu0
      %v328 = vpop.f32.mrb[0].mxu0
      %v329 = vadd.f32 0.0, %v328
      %v330 = vpop.f32.mrb[0].mxu0
      %331 = vdwg.mxu0
      %s332 = sshra.s32 %s202, 3
      %s333 = sand.u32 %s202, 7
      %s334 = smul.addr %s332, 4
      %s335 = scalar_lea.vmem %s1, %s334
      %v336 = vld [vmem:[%s335] sm:$0xf]
      %v337 = vld [vmem:[%s335 + $0x4] sm:$0xf]
      %v338 = vld [vmem:[%s335 + $0x8] sm:$0xf]
      %v339 = vld [vmem:[%s335 + $0xc] sm:$0xf]
      %v340 = vpack.c.bf16 %v321, %v318
      %v341 = vpack.c.bf16 %v329, %v326
      %v346 = vunpack.c.l.b16 %v336
      %v347 = vunpack.c.l.b16 %v337
      %v348 = vunpack.c.l.b16 %v338
      %v349 = vunpack.c.l.b16 %v339
      %v350 = vpack.c.b16 %v347, %v346
      %v351 = vpack.c.b16 %v349, %v348
      %v354 = vld [vmem:[%s2] sm:$0xf]
      %v355 = vld [vmem:[%s2 + $0x4] sm:$0xf]
      %v356 = vld [vmem:[%s2 + $0x8] sm:$0xf]
      %v357 = vld [vmem:[%s2 + $0xc] sm:$0xf]
      %v358 = vld [vmem:[%s2 + $0x10] sm:$0xf]
      %v359 = vld [vmem:[%s2 + $0x14] sm:$0xf]
      %v360 = vld [vmem:[%s2 + $0x18] sm:$0xf]
      %v361 = vld [vmem:[%s2 + $0x1c] sm:$0xf]
      %v362 = vld [vmem:[%s2 + $0x20] sm:$0xf]
      %v363 = vld [vmem:[%s2 + $0x24] sm:$0xf]
      %v364 = vld [vmem:[%s2 + $0x28] sm:$0xf]
      %v365 = vld [vmem:[%s2 + $0x2c] sm:$0xf]
      %v366 = vld [vmem:[%s2 + $0x30] sm:$0xf]
      %v367 = vld [vmem:[%s2 + $0x34] sm:$0xf]
      %v368 = vld [vmem:[%s2 + $0x38] sm:$0xf]
      %v369 = vld [vmem:[%s2 + $0x3c] sm:$0xf]
      %v370 = vld [vmem:[%s2 + $0x40] sm:$0xf]
      %v371 = vld [vmem:[%s2 + $0x44] sm:$0xf]
      %v372 = vld [vmem:[%s2 + $0x48] sm:$0xf]
      %v373 = vld [vmem:[%s2 + $0x4c] sm:$0xf]
      %v374 = vld [vmem:[%s2 + $0x50] sm:$0xf]
      %v375 = vld [vmem:[%s2 + $0x54] sm:$0xf]
      %v376 = vld [vmem:[%s2 + $0x58] sm:$0xf]
      %v377 = vld [vmem:[%s2 + $0x5c] sm:$0xf]
      %v378 = vld [vmem:[%s2 + $0x60] sm:$0xf]
      %v379 = vld [vmem:[%s2 + $0x64] sm:$0xf]
      %v380 = vld [vmem:[%s2 + $0x68] sm:$0xf]
      %v381 = vld [vmem:[%s2 + $0x6c] sm:$0xf]
      %v382 = vld [vmem:[%s2 + $0x70] sm:$0xf]
      %v383 = vld [vmem:[%s2 + $0x74] sm:$0xf]
      %v384 = vld [vmem:[%s2 + $0x78] sm:$0xf]
      %v385 = vld [vmem:[%s2 + $0x7c] sm:$0xf]
      %v386 = vld [vmem:[%s3] sm:$0x1]
      %v388 = vlaneseq
      %v389 = vshrl.u32 %v388, 7
      %v390 = vsub.s32 0, %v389
      %v391 = vrot.slane %v386, %v390
      %v425 = vunpack.c.l.b16 %v354
      %v426 = vunpack.c.l.b16 %v355
      %v427 = vunpack.c.l.b16 %v356
      %v428 = vunpack.c.l.b16 %v357
      %v429 = vunpack.c.l.b16 %v358
      %v430 = vunpack.c.l.b16 %v359
      %v431 = vunpack.c.l.b16 %v360
      %v432 = vunpack.c.l.b16 %v361
      %v433 = vunpack.c.l.b16 %v362
      %v434 = vunpack.c.l.b16 %v363
      %v435 = vunpack.c.l.b16 %v364
      %v436 = vunpack.c.l.b16 %v365
      %v437 = vunpack.c.l.b16 %v366
      %v438 = vunpack.c.l.b16 %v367
      %v439 = vunpack.c.l.b16 %v368
      %v440 = vunpack.c.l.b16 %v369
      %v441 = vunpack.c.l.b16 %v370
      %v442 = vunpack.c.l.b16 %v371
      %v443 = vunpack.c.l.b16 %v372
      %v444 = vunpack.c.l.b16 %v373
      %v445 = vunpack.c.l.b16 %v374
      %v446 = vunpack.c.l.b16 %v375
      %v447 = vunpack.c.l.b16 %v376
      %v448 = vunpack.c.l.b16 %v377
      %v449 = vunpack.c.l.b16 %v378
      %v450 = vunpack.c.l.b16 %v379
      %v451 = vunpack.c.l.b16 %v380
      %v452 = vunpack.c.l.b16 %v381
      %v453 = vunpack.c.l.b16 %v382
      %v454 = vunpack.c.l.b16 %v383
      %v455 = vunpack.c.l.b16 %v384
      %v456 = vunpack.c.l.b16 %v385
      %v457 = vpack.c.b16 %v426, %v425
      %v458 = vpack.c.b16 %v428, %v427
      %v459 = vpack.c.b16 %v430, %v429
      %v460 = vpack.c.b16 %v432, %v431
      %v461 = vpack.c.b16 %v434, %v433
      %v462 = vpack.c.b16 %v436, %v435
      %v463 = vpack.c.b16 %v438, %v437
      %v464 = vpack.c.b16 %v440, %v439
      %v465 = vpack.c.b16 %v442, %v441
      %v466 = vpack.c.b16 %v444, %v443
      %v467 = vpack.c.b16 %v446, %v445
      %v468 = vpack.c.b16 %v448, %v447
      %v469 = vpack.c.b16 %v450, %v449
      %v470 = vpack.c.b16 %v452, %v451
      %v471 = vpack.c.b16 %v454, %v453
      %v472 = vpack.c.b16 %v456, %v455
      %489 = vmatprep.subr.bf16.mxu0 0
      %490 = vmatpush1.bf16.msra.mxu0 %v457
      %491 = vmatprep.subr.bf16.mxu0 0
      %492 = vmatpush1.bf16.msra.mxu0 %v458
      %493 = vmatprep.subr.bf16.mxu0 0
      %494 = vmatpush1.bf16.msra.mxu0 %v459
      %495 = vmatprep.subr.bf16.mxu0 0
      %496 = vmatpush1.bf16.msra.mxu0 %v460
      %497 = vmatprep.subr.bf16.mxu0 0
      %498 = vmatpush1.bf16.msra.mxu0 %v461
      %499 = vmatprep.subr.bf16.mxu0 0
      %500 = vmatpush1.bf16.msra.mxu0 %v462
      %501 = vmatprep.subr.bf16.mxu0 0
      %502 = vmatpush1.bf16.msra.mxu0 %v463
      %503 = vmatprep.subr.bf16.mxu0 0
      %504 = vmatpush1.bf16.msra.mxu0 %v464
      %505 = vmatprep.subr.bf16.mxu0 0
      %506 = vmatpush1.bf16.msra.mxu0 %v465
      %507 = vmatprep.subr.bf16.mxu0 0
      %508 = vmatpush1.bf16.msra.mxu0 %v466
      %509 = vmatprep.subr.bf16.mxu0 0
      %510 = vmatpush1.bf16.msra.mxu0 %v467
      %511 = vmatprep.subr.bf16.mxu0 0
      %512 = vmatpush1.bf16.msra.mxu0 %v468
      %513 = vmatprep.subr.bf16.mxu0 0
      %514 = vmatpush1.bf16.msra.mxu0 %v469
      %515 = vmatprep.subr.bf16.mxu0 0
      %516 = vmatpush1.bf16.msra.mxu0 %v470
      %517 = vmatprep.subr.bf16.mxu0 0
      %518 = vmatpush1.bf16.msra.mxu0 %v471
      %519 = vmatprep.subr.bf16.mxu0 0
      %520 = vmatpush1.bf16.msra.mxu0 %v472
      %521 = vmatprep.mubr.bf16.mxu0 %v350
      %522 = vmatmul.mubr.bf16.gmra.mrb[0].mxu0 %v340
      %v523 = vpop.f32.mrb[0].mxu0
      %v524 = vadd.f32 %v391, %v523
      %v525 = vpop.f32.mrb[0].mxu0
      %v526 = vpop.f32.mrb[0].mxu0
      %v527 = vadd.f32 %v391, %v526
      %v528 = vpop.f32.mrb[0].mxu0
      %529 = vmatprep.mubr.bf16.mxu0 %v351
      %530 = vmatmul.mubr.bf16.gmra.mrb[0].mxu0 %v341
      %v531 = vpop.f32.mrb[0].mxu0
      %v532 = vadd.f32 %v391, %v531
      %v533 = vpop.f32.mrb[0].mxu0
      %v534 = vpop.f32.mrb[0].mxu0
      %v535 = vadd.f32 %v391, %v534
      %v536 = vpop.f32.mrb[0].mxu0
      %537 = vdwg.mxu0
      %v538 = vpack.c.bf16 %v527, %v524
      %v539 = vpack.c.bf16 %v535, %v532
      %v542 = vunpack.c.l.b16 %v538
      %v543 = vunpack.c.h.b16 %v538
      %v544 = vunpack.c.l.b16 %v539
      %v545 = vunpack.c.h.b16 %v539
      %v546 = vpack.c.b16 %v542, %v542
      %v547 = vpack.c.b16 %v543, %v543
      %v548 = vpack.c.b16 %v544, %v544
      %v549 = vpack.c.b16 %v545, %v545
      %554 = vst [vmem:[%s199] sm:$0xf] %v546
      %555 = vst [vmem:[%s199 + $0x4] sm:$0xf] %v547
      %556 = vst [vmem:[%s199 + $0x8] sm:$0xf] %v548
      %557 = vst [vmem:[%s199 + $0xc] sm:$0xf] %v549
      %s558 = smul.u32 4, %s15
      %p559 = scmp.lt.s32.totalorder %s558, 15
      %s560 = scalar_select %p559, %s558, 15
      %s561 = smul.addr %s560, 4
      %s562 = scalar_lea.vmem %s4, %s561
      // Predicated region
      $region37: #{graphconv_decoder.2} parent=35 // pred_check
        %p563 = pneg %p122
      $region38: #{graphconv_decoder.2} parent=35 // pred_check_branch
        %565 = sbr.rel (%p563) target = $region40
      $region39: #{graphconv_decoder.2} parent=35 // pred_region
        %s566 = smul.u32 4, %s15
      $region40: #{graphconv_decoder.2} parent=35 // pred_fallthru
        _
    $region36: #{graphconv_decoder.2} parent=5 // pred_fallthru
      _
    %p567 = scmp.le.s32.totalorder 2, %s10
    // Predicated region
    $region41: #{graphconv_decoder.2} parent=5 // pred_check
      %p568 = pneg %p567
    $region42: #{graphconv_decoder.2} parent=5 // pred_check_branch
      %570 = sbr.rel (%p568) target = $region44
    $region43: #{graphconv_decoder.2} parent=5 // pred_region
      %s571 = ssub.s32 %s10, 2
      // Predicated region
      $region45: #{graphconv_decoder.2} parent=43 // pred_check
        %p572 = pneg %p128
      $region46: #{graphconv_decoder.2} parent=43 // pred_check_branch
        %574 = sbr.rel (%p572) target = $region48
      $region47: #{graphconv_decoder.2} parent=43 // pred_region
        %s575 = smul.u32 4, %s16
        %p576 = scmp.lt.s32.totalorder %s575, 15
        %s577 = scalar_select %p576, %s575, 15
        %s578 = smul.addr %s577, 4
        %s579 = scalar_lea.vmem %s4, %s578
      $region48: #{graphconv_decoder.2} parent=43 // pred_fallthru
        _
    $region44: #{graphconv_decoder.2} parent=5 // pred_fallthru
      _
  $region6: #{graphconv_decoder.2} parent=0 // loop_footer
    %s14 = sadd.s32 1, %s10
  $region7: #{graphconv_decoder.2} parent=0 // loop_footer_branch
    %9 = sbr.rel target = $region3
  $region8: #{graphconv_decoder.2} parent=0 // loop_exit
    _

</llo_original>
